<compile_context>
chip_gen: v6e
topology: v6e:2x2x1
jax: 0.10.0
libtpu: 0.0.40
codegen_flags: <defaults>
</compile_context>

<pallas_src>
import functools
import math

import jax
import jax.numpy as jnp
from jax.experimental import pallas as pl
from jax.experimental.pallas import tpu as pltpu

_NEG_LOG_1E4 = -math.log(1e-4)   # ~ 9.2103403719761836
_OUT_BLOCK = (8, 128)            # lane/sublane aligned per-tile output block


def _rce_kernel(pred_ref, labels_ref, out_ref, *, tile_n, total_n):
    """One batch tile: softmax + lower clamp + masked sum of non-label probs.

    Splats the tile's partial sum over its (8, 128) output block (unmasked
    lane-dense store); the wrapper reads one element per tile."""
    logits = pred_ref[...].astype(jnp.float32)                  # (TN, C)

    # softmax over the class axis (dim=1)
    m = jnp.max(logits, axis=1, keepdims=True)
    e = jnp.exp(logits - m)
    denom = jnp.sum(e, axis=1, keepdims=True)
    # EUP approx reciprocal (otherwise-idle slot) + one Newton refinement:
    # error ~2^-24, far below the 1e-5 comparison tolerance.
    r = pl.reciprocal(denom, approx=True)
    r = r * (jnp.float32(2.0) - denom * r)
    p = e * r
    # upper clamp (<= 1.0) is a no-op for softmax output, keep only the floor
    p = jnp.maximum(p, jnp.float32(1e-7))

    # class mask: drop the label column (its log(one_hot)=log(1)=0 term)
    cls_ids = jax.lax.broadcasted_iota(jnp.int32, logits.shape, 1)   # (TN, C)
    lbl = labels_ref[...]                                            # (TN, 1) int32
    class_mask = cls_ids != lbl

    def _write(keep):
        row_sums = jnp.sum(jnp.where(keep, p, jnp.float32(0.0)),
                           axis=1, keepdims=True)                    # (TN, 1)
        tile_sum = jnp.sum(row_sums, axis=0, keepdims=True)          # (1, 1)
        out_ref[...] = jnp.broadcast_to(tile_sum, _OUT_BLOCK)

    if total_n % tile_n == 0:
        # every tile is fully valid: no row mask anywhere (trace-time fast path)
        _write(class_mask)
    else:
        i = pl.program_id(0)
        is_last = i == pl.num_programs(0) - 1

        @pl.when(jnp.logical_not(is_last))
        def _():
            _write(class_mask)

        @pl.when(is_last)
        def _():
            # ragged last tile: rows past N are OOB garbage (possibly NaN after
            # softmax) — jnp.where selects 0 for them, so they never leak.
            row_ids = i * tile_n + jax.lax.broadcasted_iota(
                jnp.int32, logits.shape, 0)
            _write(class_mask & (row_ids < total_n))


def _round_up(x, m):
    return ((x + m - 1) // m) * m


def _vmem_budget():
    """Generation-aware (tile budget, scoped vmem limit) in bytes."""
    try:
        cap = getattr(pltpu.get_tpu_info(), "vmem_capacity_bytes",
                      64 * 1024 * 1024)
    except Exception:  # pragma: no cover - conservative fallback
        cap = 64 * 1024 * 1024
    if cap >= 100 * 1024 * 1024:          # v5e / v6e: 128 MiB physical VMEM
        return 24 * 1024 * 1024, 64 * 1024 * 1024
    return 12 * 1024 * 1024, 32 * 1024 * 1024   # v7x: 64 MiB per TensorCore


def _pick_tile_n(n, c, itemsize, vmem_budget_bytes):
    """Largest batch tile (multiple of 8) whose double-buffered inputs plus
    f32 temporaries fit the budget, accounting for lane padding to 128."""
    cp = _round_up(c, 128)                    # Mosaic lane-pads the class axis
    per_row_bytes = (
        2 * cp * itemsize                     # double-buffered pred tiles
        + 2 * 128 * 4                         # double-buffered (TN,1) i32 labels, lane-padded
        + 5 * cp * 4                          # ~5 full-tile f32/i32 temps (logits, e, p, iota, where)
        + 4 * 128 * 4                         # per-row (TN,1) f32 temps (m, denom, r, row sums)
    )
    tile = vmem_budget_bytes // max(per_row_bytes, 1)
    tile = min(tile, 2048)                    # per-step overhead fully amortized here
    tile = min(tile, _round_up(n, 8))         # never larger than the batch (rounded to sublanes)
    tile = max(8, (tile // 8) * 8)
    return int(tile)


def reverse_cross_entropy(pred, labels, *, num_classes, scale=1.0, tile_n=None):
    """pred: [N, C] float logits (f32 or bf16 -- kept in its input dtype so HBM
    traffic is halved for bf16; upcast happens per-tile in VMEM).
    labels: [N] int.  Returns a scalar float32."""
    N, C = pred.shape
    assert C == num_classes

    budget, vmem_limit = _vmem_budget()
    if tile_n is None:
        tile_n = _pick_tile_n(N, C, pred.dtype.itemsize, budget)
    tile_n = max(8, (int(tile_n) // 8) * 8)

    # No padding of pred: ragged last tile is masked in-kernel.
    num_tiles = int(pl.cdiv(N, tile_n))
    # Labels stay a (N, 1) column so the broadcast compare needs no in-kernel
    # relayout; the block is lane-padded but carries only tile_n*4 B of data.
    labels2d = labels.reshape(N, 1).astype(jnp.int32)

    kernel = functools.partial(_rce_kernel, tile_n=tile_n, total_n=N)

    partials = pl.pallas_call(
        kernel,
        out_shape=jax.ShapeDtypeStruct(
            (num_tiles * _OUT_BLOCK[0], _OUT_BLOCK[1]), jnp.float32),
        grid_spec=pltpu.PrefetchScalarGridSpec(
            num_scalar_prefetch=0,
            grid=(num_tiles,),
            in_specs=[
                pl.BlockSpec((tile_n, C), lambda i: (i, 0)),   # pred tile
                pl.BlockSpec((tile_n, 1), lambda i: (i, 0)),   # labels tile
            ],
            out_specs=pl.BlockSpec(_OUT_BLOCK, lambda i: (i, 0)),  # per-tile partial
        ),
        compiler_params=pltpu.CompilerParams(
            dimension_semantics=("parallel",),   # independent tiles -> megacore / v7x 2-TC
            vmem_limit_bytes=vmem_limit,
        ),
    )(pred, labels2d)

    # one element per tile (the block is a splat), then fold -log(1e-4), the
    # scale and the mean's 1/N into one scalar multiply
    per_tile = partials.reshape(num_tiles, _OUT_BLOCK[0], _OUT_BLOCK[1])[:, 0, 0]
    return (jnp.float32(scale * _NEG_LOG_1E4 / N)
            * jnp.sum(per_tile)).astype(jnp.float32)


def _reference(pred, labels, num_classes, scale=1.0):
    p = jax.nn.softmax(pred.astype(jnp.float32), axis=1)
    p = jnp.clip(p, 1e-07, 1.0)
    oh = jax.nn.one_hot(labels, num_classes, dtype=jnp.float32)
    oh = jnp.clip(oh, 1e-4, 1.0)
    rce = -jnp.sum(p * jnp.log(oh), axis=1)
    return scale * jnp.mean(rce)


if __name__ == "__main__":
    key = jax.random.PRNGKey(0)
    k1, k2, k3, k4, k5, k6 = jax.random.split(key, 6)

    # 1) small classifier head, ragged batch (exercises the masked last tile)
    N, C = 37, 10
    pred = jax.random.normal(k1, (N, C), dtype=jnp.float32)
    labels = jax.random.randint(k2, (N,), 0, C, dtype=jnp.int32)
    out = jax.block_until_ready(
        reverse_cross_entropy(pred, labels, num_classes=C, scale=0.5))
    ref = _reference(pred, labels, C, scale=0.5)
    assert jnp.allclose(out, ref, rtol=1e-5, atol=1e-5), (out, ref)

    # 2) multi-tile ragged path (forced small tile) + bf16 logits (halved HBM)
    N2, C2 = 300, 128
    pred2 = jax.random.normal(k3, (N2, C2), dtype=jnp.float32).astype(jnp.bfloat16)
    labels2 = jax.random.randint(k4, (N2,), 0, C2, dtype=jnp.int32)
    out2 = jax.block_until_ready(
        reverse_cross_entropy(pred2, labels2, num_classes=C2, scale=1.0, tile_n=64))
    ref2 = _reference(pred2, labels2, C2, scale=1.0)
    assert jnp.allclose(out2, ref2, rtol=1e-5, atol=1e-5), (out2, ref2)

    # 3) batch divisible by the auto tile -> trace-time fast path (no row mask)
    N3, C3 = 128, 16
    pred3 = jax.random.normal(k5, (N3, C3), dtype=jnp.float32)
    labels3 = jax.random.randint(k6, (N3,), 0, C3, dtype=jnp.int32)
    out3 = jax.block_until_ready(
        reverse_cross_entropy(pred3, labels3, num_classes=C3, scale=2.0))
    ref3 = _reference(pred3, labels3, C3, scale=2.0)
    assert jnp.allclose(out3, ref3, rtol=1e-5, atol=1e-5), (out3, ref3)

    print("KERNEL_OK")
</pallas_src>

<mosaic_0001>
module attributes {stable_mosaic.version = 11 : i64} {
  func.func @_rce_kernel(%arg0: i32, %arg1: memref<40x10xf32, #tpu.memory_space<vmem>>, %arg2: memref<40x1xi32, #tpu.memory_space<vmem>>, %arg3: memref<8x128xf32, #tpu.memory_space<vmem>>) attributes {dimension_semantics = [#tpu.dimension_semantics<parallel>], iteration_bounds = array<i64: 1>, scalar_prefetch = 0 : i64, scratch_operands = 0 : i64, tpu.core_type = #tpu.core_type<tc>, window_params = [{transform_indices = @transform_0, window_bounds = array<i64: 40, 10>}, {transform_indices = @transform_1, window_bounds = array<i64: 40, 1>}, {transform_indices = @transform_2, window_bounds = array<i64: 8, 128>}]} {
    %c0 = arith.constant 0 : index
    %c0_0 = arith.constant 0 : index
    %0 = vector.load %arg1[%c0, %c0_0] : memref<40x10xf32, #tpu.memory_space<vmem>>, vector<40x10xf32>
    %cst = arith.constant dense<0xFF800000> : vector<40xf32>
    %1 = vector.multi_reduction <maximumf>, %0, %cst [1] : vector<40x10xf32> to vector<40xf32>
    %2 = vector.shape_cast %1 : vector<40xf32> to vector<40x1xf32>
    %3 = vector.broadcast %2 : vector<40x1xf32> to vector<40x10xf32>
    %4 = arith.subf %0, %3 : vector<40x10xf32>
    %5 = math.exp %4 : vector<40x10xf32>
    %cst_1 = arith.constant dense<0.000000e+00> : vector<40xf32>
    %6 = vector.multi_reduction <add>, %5, %cst_1 [1] : vector<40x10xf32> to vector<40xf32>
    %7 = vector.shape_cast %6 : vector<40xf32> to vector<40x1xf32>
    %8 = tpu.reciprocal %7 {approx = true} : vector<40x1xf32> -> vector<40x1xf32>
    %9 = arith.mulf %7, %8 : vector<40x1xf32>
    %cst_2 = arith.constant 2.000000e+00 : f32
    %10 = vector.broadcast %cst_2 : f32 to vector<40x1xf32>
    %11 = arith.subf %10, %9 : vector<40x1xf32>
    %12 = arith.mulf %8, %11 : vector<40x1xf32>
    %13 = vector.broadcast %12 : vector<40x1xf32> to vector<40x10xf32>
    %14 = arith.mulf %5, %13 : vector<40x10xf32>
    %cst_3 = arith.constant 1.000000e-07 : f32
    %15 = vector.broadcast %cst_3 : f32 to vector<40x10xf32>
    %16 = arith.maximumf %14, %15 : vector<40x10xf32>
    %17 = tpu.iota {dimensions = array<i32: 1>} : vector<40x10xi32>
    %c0_4 = arith.constant 0 : index
    %c0_5 = arith.constant 0 : index
    %18 = vector.load %arg2[%c0_4, %c0_5] : memref<40x1xi32, #tpu.memory_space<vmem>>, vector<40x1xi32>
    %19 = vector.broadcast %18 : vector<40x1xi32> to vector<40x10xi32>
    %20 = arith.cmpi ne, %17, %19 : vector<40x10xi32>
    %c0_i32 = arith.constant 0 : i32
    %21 = arith.cmpi eq, %arg0, %c0_i32 : i32
    %true = arith.constant true
    %22 = arith.xori %21, %true : i1
    %23 = arith.extui %22 : i1 to i32
    %c0_i32_6 = arith.constant 0 : i32
    %24 = arith.cmpi ne, %23, %c0_i32_6 : i32
    scf.if %24 {
      %cst_8 = arith.constant 0.000000e+00 : f32
      %27 = vector.broadcast %cst_8 : f32 to vector<40x10xf32>
      %28 = arith.select %20, %16, %27 : vector<40x10xi1>, vector<40x10xf32>
      %cst_9 = arith.constant dense<0.000000e+00> : vector<40xf32>
      %29 = vector.multi_reduction <add>, %28, %cst_9 [1] : vector<40x10xf32> to vector<40xf32>
      %30 = vector.shape_cast %29 : vector<40xf32> to vector<40x1xf32>
      %cst_10 = arith.constant dense<0.000000e+00> : vector<1xf32>
      %31 = vector.multi_reduction <add>, %30, %cst_10 [0] : vector<40x1xf32> to vector<1xf32>
      %32 = vector.shape_cast %31 : vector<1xf32> to vector<1x1xf32>
      %33 = vector.shape_cast %32 : vector<1x1xf32> to vector<1x1xf32>
      %34 = vector.broadcast %33 : vector<1x1xf32> to vector<8x128xf32>
      %c0_11 = arith.constant 0 : index
      %c0_12 = arith.constant 0 : index
      %35 = vector.load %arg3[%c0_11, %c0_12] : memref<8x128xf32, #tpu.memory_space<vmem>>, vector<8x128xf32>
      tpu.vector_store %arg3[%c0_11, %c0_12], %34 {strides = array<i32>} : memref<8x128xf32, #tpu.memory_space<vmem>>, vector<8x128xf32>,
    } else {
    }
    %25 = arith.extui %21 : i1 to i32
    %c0_i32_7 = arith.constant 0 : i32
    %26 = arith.cmpi ne, %25, %c0_i32_7 : i32
    scf.if %26 {
      %c40_i32 = arith.constant 40 : i32
      %27 = arith.muli %arg0, %c40_i32 : i32
      %28 = tpu.iota {dimensions = array<i32: 0>} : vector<40x10xi32>
      %29 = vector.broadcast %27 : i32 to vector<40x10xi32>
      %30 = arith.addi %29, %28 : vector<40x10xi32>
      %c37_i32 = arith.constant 37 : i32
      %31 = vector.broadcast %c37_i32 : i32 to vector<40x10xi32>
      %32 = arith.cmpi slt, %30, %31 : vector<40x10xi32>
      %33 = arith.andi %20, %32 : vector<40x10xi1>
      %cst_8 = arith.constant 0.000000e+00 : f32
      %34 = vector.broadcast %cst_8 : f32 to vector<40x10xf32>
      %35 = arith.select %33, %16, %34 : vector<40x10xi1>, vector<40x10xf32>
      %cst_9 = arith.constant dense<0.000000e+00> : vector<40xf32>
      %36 = vector.multi_reduction <add>, %35, %cst_9 [1] : vector<40x10xf32> to vector<40xf32>
      %37 = vector.shape_cast %36 : vector<40xf32> to vector<40x1xf32>
      %cst_10 = arith.constant dense<0.000000e+00> : vector<1xf32>
      %38 = vector.multi_reduction <add>, %37, %cst_10 [0] : vector<40x1xf32> to vector<1xf32>
      %39 = vector.shape_cast %38 : vector<1xf32> to vector<1x1xf32>
      %40 = vector.shape_cast %39 : vector<1x1xf32> to vector<1x1xf32>
      %41 = vector.broadcast %40 : vector<1x1xf32> to vector<8x128xf32>
      %c0_11 = arith.constant 0 : index
      %c0_12 = arith.constant 0 : index
      %42 = vector.load %arg3[%c0_11, %c0_12] : memref<8x128xf32, #tpu.memory_space<vmem>>, vector<8x128xf32>
      tpu.vector_store %arg3[%c0_11, %c0_12], %41 {strides = array<i32>} : memref<8x128xf32, #tpu.memory_space<vmem>>, vector<8x128xf32>,
    } else {
    }
    return
  }
  func.func @transform_0(%arg0: i32) -> (i32, i32) {
    %c0_i32 = arith.constant 0 : i32
    %c0_i32_0 = arith.constant 0 : i32
    return %arg0, %c0_i32 : i32, i32
  }
  func.func @transform_1(%arg0: i32) -> (i32, i32) {
    %c0_i32 = arith.constant 0 : i32
    %c0_i32_0 = arith.constant 0 : i32
    return %arg0, %c0_i32 : i32, i32
  }
  func.func @transform_2(%arg0: i32) -> (i32, i32) {
    %c0_i32 = arith.constant 0 : i32
    %c0_i32_0 = arith.constant 0 : i32
    return %arg0, %c0_i32 : i32, i32
  }
}

</mosaic_0001>

<llo_original>
// kernel: tpu_custom_call.1
$region0: #{tpu_custom_call.1}
  #allocation0 [shape = 'u32[]', space=smem, size = 0x4, offset = 0x4, fixed_abs, tag = 'smem constant byte address 0x4 - core index']
  #allocation1 [shape = 'u32[144,128]{1,0:T(1,128)}', space=vmem, size = 0x12000, scoped, tag = 'internal scratch']
  %s0 = inlined_call_operand.vmem [shape: f32[37,10], index: 0, kind: input, shape index: {}]
  %s1 = inlined_call_operand.vmem [shape: s32[37,1], index: 1, kind: input, shape index: {}]
  %s2 = inlined_call_operand.hbm [shape: f32[8,128], index: 2, kind: output, shape index: {}]
  %s3 = sld [smem:[#allocation0]]
  $region26: #{tpu_custom_call.1} parent=0
    _
  %s5 = ssub.s32 1, %s3
  %s6 = scalar_select 0, %s5, %s3
  $region1: #{tpu_custom_call.1} parent=0
    #allocation2 [shape = 'u8[4096]{0}', space=vmem, size = 0x1000, scoped, tag = 'output window, operand 0, single buffered']
    #allocation3 [shape = 's32[1]{0}', space=sflag, size = 0x4, scoped, tag = 'scoped memory for tpu_custom_call.1']
    %7 = vsyncpa [#allocation3], 0
    // Predicated region
    $region2: #{tpu_custom_call.1} parent=1 // pred_check
      _
    $region3: #{tpu_custom_call.1} parent=1 // pred_check_branch
      %9 = sbr.rel (0) target = $region5
    $region4: #{tpu_custom_call.1} parent=1 // pred_region
      _
    $region5: #{tpu_custom_call.1} parent=1 // pred_fallthru
      _
    // Predicated region
    $region6: #{tpu_custom_call.1} parent=1 // pred_check
      _
    $region7: #{tpu_custom_call.1} parent=1 // pred_check_branch
      %11 = sbr.rel (0) target = $region9
    $region8: #{tpu_custom_call.1} parent=1 // pred_region
      _
    $region9: #{tpu_custom_call.1} parent=1 // pred_fallthru
      _
    %v12 = vld [vmem:[%s0] sm:$0xff]
    %v13 = vld [vmem:[%s0 + $0x8] sm:$0xff]
    %v14 = vld [vmem:[%s0 + $0x10] sm:$0xff]
    %v15 = vld [vmem:[%s0 + $0x18] sm:$0xff]
    %v16 = vld [vmem:[%s0 + $0x20] sm:$0xff]
    %vm17 = vcmask 80896
    %v18 = vsel %vm17, %v12, -inf
    %19 = vmax.xlane.f32.xlu0 %v18
    %v20 = vpop.xlane.xlu0 %19
    %v21 = vsel %vm17, %v13, -inf
    %22 = vmax.xlane.f32.xlu0 %v21
    %v23 = vpop.xlane.xlu0 %22
    %v24 = vsel %vm17, %v14, -inf
    %25 = vmax.xlane.f32.xlu0 %v24
    %v26 = vpop.xlane.xlu0 %25
    %v27 = vsel %vm17, %v15, -inf
    %28 = vmax.xlane.f32.xlu0 %v27
    %v29 = vpop.xlane.xlu0 %28
    %v30 = vsel %vm17, %v16, -inf
    %31 = vmax.xlane.f32.xlu0 %v30
    %v32 = vpop.xlane.xlu0 %31
    %v33 = vsub.f32 %v12, %v20
    %v34 = vsub.f32 %v13, %v23
    %v35 = vsub.f32 %v14, %v26
    %v36 = vsub.f32 %v15, %v29
    %v37 = vsub.f32 %v16, %v32
    %v38 = vmul.f32 %v33, 1.442695
    %v39 = vpow.pop %v38
    %v40 = vmul.f32 %v34, 1.442695
    %v41 = vpow.pop %v40
    %v42 = vmul.f32 %v35, 1.442695
    %v43 = vpow.pop %v42
    %v44 = vmul.f32 %v36, 1.442695
    %v45 = vpow.pop %v44
    %v46 = vmul.f32 %v37, 1.442695
    %v47 = vpow.pop %v46
    %v48 = vsel %vm17, %v39, 0.0
    %49 = vadd.xlane.f32.xlu0 %v48
    %v50 = vpop.xlane.xlu0 %49
    %v51 = vsel %vm17, %v41, 0.0
    %52 = vadd.xlane.f32.xlu0 %v51
    %v53 = vpop.xlane.xlu0 %52
    %v54 = vsel %vm17, %v43, 0.0
    %55 = vadd.xlane.f32.xlu0 %v54
    %v56 = vpop.xlane.xlu0 %55
    %v57 = vsel %vm17, %v45, 0.0
    %58 = vadd.xlane.f32.xlu0 %v57
    %v59 = vpop.xlane.xlu0 %58
    %v60 = vsel %vm17, %v47, 0.0
    %61 = vadd.xlane.f32.xlu0 %v60
    %v62 = vpop.xlane.xlu0 %61
    %v63 = vrcp.pop %v50
    %v64 = vrcp.pop %v53
    %v65 = vrcp.pop %v56
    %v66 = vrcp.pop %v59
    %v67 = vrcp.pop %v62
    %v68 = vmul.f32 %v50, %v63
    %v69 = vmul.f32 %v53, %v64
    %v70 = vmul.f32 %v56, %v65
    %v71 = vmul.f32 %v59, %v66
    %v72 = vmul.f32 %v62, %v67
    %v73 = vsub.f32 2.0, %v68
    %v74 = vsub.f32 2.0, %v69
    %v75 = vsub.f32 2.0, %v70
    %v76 = vsub.f32 2.0, %v71
    %v77 = vsub.f32 2.0, %v72
    %v78 = vmul.f32 %v63, %v73
    %v79 = vmul.f32 %v64, %v74
    %v80 = vmul.f32 %v65, %v75
    %v81 = vmul.f32 %v66, %v76
    %v82 = vmul.f32 %v67, %v77
    %v83 = vmul.f32 %v39, %v78
    %v84 = vmul.f32 %v41, %v79
    %v85 = vmul.f32 %v43, %v80
    %v86 = vmul.f32 %v45, %v81
    %v87 = vmul.f32 %v47, %v82
    %v88 = vmax.f32 %v83, 1e-07
    %v89 = vmax.f32 %v84, 1e-07
    %v90 = vmax.f32 %v85, 1e-07
    %v91 = vmax.f32 %v86, 1e-07
    %v92 = vmax.f32 %v87, 1e-07
    %v93 = vlaneseq
    %v94 = vand.u32 %v93, 127
    %v95 = vld [vmem:[%s1] sm:$0xff]
    %v96 = vld [vmem:[%s1 + $0x8] sm:$0xff]
    %v97 = vld [vmem:[%s1 + $0x10] sm:$0xff]
    %v98 = vld [vmem:[%s1 + $0x18] sm:$0xff]
    %v99 = vld [vmem:[%s1 + $0x20] sm:$0xff]
    %100 = vset.pattern.permute.xlu0 0
    %101 = vperm.xlu0 %100, %v95
    %v102 = vpop.permute.xlu0 %101
    %103 = vset.pattern.permute.xlu0 0
    %104 = vperm.xlu0 %103, %v96
    %v105 = vpop.permute.xlu0 %104
    %106 = vset.pattern.permute.xlu0 0
    %107 = vperm.xlu0 %106, %v97
    %v108 = vpop.permute.xlu0 %107
    %109 = vset.pattern.permute.xlu0 0
    %110 = vperm.xlu0 %109, %v98
    %v111 = vpop.permute.xlu0 %110
    %112 = vset.pattern.permute.xlu0 0
    %113 = vperm.xlu0 %112, %v99
    %v114 = vpop.permute.xlu0 %113
    %vm115 = vcmp.ne.s32.totalorder %v94, %v102
    %vm116 = vcmp.ne.s32.totalorder %v94, %v105
    %vm117 = vcmp.ne.s32.totalorder %v94, %v108
    %vm118 = vcmp.ne.s32.totalorder %v94, %v111
    %vm119 = vcmp.ne.s32.totalorder %v94, %v114
    %p120 = scmp.eq.s32.totalorder 0, 0
    %p121 = scmp.ne.s32.totalorder 0, 0
    // Predicated region
    $region10: #{tpu_custom_call.1} parent=1 // pred_check
      %p122 = pneg %p121
    $region11: #{tpu_custom_call.1} parent=1 // pred_check_branch
      %124 = sbr.rel (%p122) target = $region13
    $region12: #{tpu_custom_call.1} parent=1 // pred_region
      %v125 = vsel %vm115, %v88, 0.0
      %v126 = vsel %vm116, %v89, 0.0
      %v127 = vsel %vm117, %v90, 0.0
      %v128 = vsel %vm118, %v91, 0.0
      %v129 = vsel %vm119, %v92, 0.0
      %v130 = vsel %vm17, %v125, 0.0
      %131 = vadd.xlane.f32.xlu0 %v130
      %v132 = vpop.xlane.xlu0 %131
      %v133 = vsel %vm17, %v126, 0.0
      %134 = vadd.xlane.f32.xlu0 %v133
      %v135 = vpop.xlane.xlu0 %134
      %v136 = vsel %vm17, %v127, 0.0
      %137 = vadd.xlane.f32.xlu0 %v136
      %v138 = vpop.xlane.xlu0 %137
      %v139 = vsel %vm17, %v128, 0.0
      %140 = vadd.xlane.f32.xlu0 %v139
      %v141 = vpop.xlane.xlu0 %140
      %v142 = vsel %vm17, %v129, 0.0
      %143 = vadd.xlane.f32.xlu0 %v142
      %v144 = vpop.xlane.xlu0 %143
      %v145 = vadd.f32 %v132, %v135
      %v146 = vadd.f32 %v145, %v138
      %v147 = vadd.f32 %v146, %v141
      %v148 = vadd.f32 %v147, %v144
      %v149 = vrot.slane %v148, 4
      %v150 = vadd.f32 %v148, %v149
      %v151 = vrot.slane %v150, 2
      %v152 = vadd.f32 %v150, %v151
      %v153 = vrot.slane %v152, 1
      %v154 = vadd.f32 %v152, %v153
      %155 = vst [vmem:[#allocation2] sm:$0xff] %v154
    $region13: #{tpu_custom_call.1} parent=1 // pred_fallthru
      _
    // Predicated region
    $region14: #{tpu_custom_call.1} parent=1 // pred_check
      %p156 = pneg %p120
    $region15: #{tpu_custom_call.1} parent=1 // pred_check_branch
      %158 = sbr.rel (%p156) target = $region17
    $region16: #{tpu_custom_call.1} parent=1 // pred_region
      %s159 = smul.u32 0, 40
      %v160 = vlaneseq
      %v161 = vshrl.u32 %v160, 7
      %v162 = vadd.s32 %v161, 8
      %v163 = vadd.s32 %v161, 16
      %v164 = vadd.s32 %v161, 24
      %v165 = vadd.s32 %v161, 32
      %v166 = vstv %s159
      %v167 = vadd.s32 %v166, %v161
      %v168 = vadd.s32 %v166, %v162
      %v169 = vadd.s32 %v166, %v163
      %v170 = vadd.s32 %v166, %v164
      %v171 = vadd.s32 %v166, %v165
      %vm172 = vcmp.lt.s32.totalorder %v167, 37
      %vm173 = vcmp.lt.s32.totalorder %v168, 37
      %vm174 = vcmp.lt.s32.totalorder %v169, 37
      %vm175 = vcmp.lt.s32.totalorder %v170, 37
      %vm176 = vcmp.lt.s32.totalorder %v171, 37
      %vm177 = vmand %vm115, %vm172
      %vm178 = vmand %vm116, %vm173
      %vm179 = vmand %vm117, %vm174
      %vm180 = vmand %vm118, %vm175
      %vm181 = vmand %vm119, %vm176
      %v182 = vsel %vm177, %v88, 0.0
      %v183 = vsel %vm178, %v89, 0.0
      %v184 = vsel %vm179, %v90, 0.0
      %v185 = vsel %vm180, %v91, 0.0
      %v186 = vsel %vm181, %v92, 0.0
      %v187 = vsel %vm17, %v182, 0.0
      %188 = vadd.xlane.f32.xlu0 %v187
      %v189 = vpop.xlane.xlu0 %188
      %v190 = vsel %vm17, %v183, 0.0
      %191 = vadd.xlane.f32.xlu0 %v190
      %v192 = vpop.xlane.xlu0 %191
      %v193 = vsel %vm17, %v184, 0.0
      %194 = vadd.xlane.f32.xlu0 %v193
      %v195 = vpop.xlane.xlu0 %194
      %v196 = vsel %vm17, %v185, 0.0
      %197 = vadd.xlane.f32.xlu0 %v196
      %v198 = vpop.xlane.xlu0 %197
      %v199 = vsel %vm17, %v186, 0.0
      %200 = vadd.xlane.f32.xlu0 %v199
      %v201 = vpop.xlane.xlu0 %200
      %v202 = vadd.f32 %v189, %v192
      %v203 = vadd.f32 %v202, %v195
      %v204 = vadd.f32 %v203, %v198
      %v205 = vadd.f32 %v204, %v201
      %v206 = vrot.slane %v205, 4
      %v207 = vadd.f32 %v205, %v206
      %v208 = vrot.slane %v207, 2
      %v209 = vadd.f32 %v207, %v208
      %v210 = vrot.slane %v209, 1
      %v211 = vadd.f32 %v209, %v210
      %212 = vst [vmem:[#allocation2] sm:$0xff] %v211
    $region17: #{tpu_custom_call.1} parent=1 // pred_fallthru
      _
    // Predicated region
    $region18: #{tpu_custom_call.1} parent=1 // pred_check
      _
    $region19: #{tpu_custom_call.1} parent=1 // pred_check_branch
      %214 = sbr.rel (0) target = $region21
    $region20: #{tpu_custom_call.1} parent=1 // pred_region
      %s216 = ssub.s32 128, 128
      %217 = vsyncadd [#allocation3], %s216
      %s219 = sshll.u32 [#allocation2], 4
      %s220 = int_to_ptr.vmem [resolvable:$true] %s219
      %222 = dma.vmem_to_hbm [thread:$0]  %s220, 128, %s2, [#allocation3]
    $region21: #{tpu_custom_call.1} parent=1 // pred_fallthru
      _
    // Predicated region
    $region22: #{tpu_custom_call.1} parent=1 // pred_check
      _
    $region23: #{tpu_custom_call.1} parent=1 // pred_check_branch
      %224 = sbr.rel (0) target = $region25
    $region24: #{tpu_custom_call.1} parent=1 // pred_region
      %225 = dma.done [#allocation3], 128
    $region25: #{tpu_custom_call.1} parent=1 // pred_fallthru
      _
    %226 = vsyncpa [#allocation3], 1

</llo_original>
